<compile_context>
chip_gen: v7x
topology: tpu7x:2x2x1
jax: 0.10.0
libtpu: 0.0.40
codegen_flags: <defaults>
</compile_context>

<pallas_src>
import functools
import math

import jax
import jax.numpy as jnp
import numpy as np
from jax import lax
from jax.experimental import pallas as pl
from jax.experimental.pallas import tpu as pltpu

_MASK_VALUE = -1e30  # large finite "minus infinity" for masked scores (NaN-safe)


def _round_up(x, m):
    return ((x + m - 1) // m) * m


def _flash_causal_kernel(qi_ref, ki_ref, x_ref, w_ref, o_ref,
                         q_scr, k_scr, v_scr, m_scr, l_scr, acc_scr,
                         *, d_pad, tile):
    t = pl.program_id(1)
    qi = qi_ref[t]
    ki = ki_ref[t]

    @pl.when(ki == qi)
    def _diag_step():
        # First kv step of this q row (ki runs qi, qi-1, ..., 0):
        #  * one wide MXU pass projects Q|K|V for this tile (1/sqrt(d_out) folded
        #    into W_q by the wrapper),
        #  * K|V are written into the persistent VMEM cache slot `qi` for later rows,
        #  * this is the only block that needs the causal mask,
        #  * online-softmax state is initialized here (diagonal always has at least
        #    one unmasked element per row, so m stays finite -> no NaN from exp).
        qkv = jnp.dot(x_ref[...], w_ref[...], preferred_element_type=jnp.float32)
        q = qkv[:, :d_pad].astype(q_scr.dtype)
        k = qkv[:, d_pad:2 * d_pad].astype(k_scr.dtype)
        v = qkv[:, 2 * d_pad:].astype(v_scr.dtype)
        q_scr[...] = q
        row0 = pl.multiple_of(qi * tile, tile)
        k_scr[pl.ds(row0, tile), :] = k
        v_scr[pl.ds(row0, tile), :] = v

        # scores = q @ k^T without materializing a transpose of k.
        s = lax.dot_general(q, k, dimension_numbers=(((1,), (1,)), ((), ())),
                            preferred_element_type=jnp.float32)
        q_pos = lax.broadcasted_iota(jnp.int32, (tile, tile), 0)
        k_pos = lax.broadcasted_iota(jnp.int32, (tile, tile), 1)
        s = jnp.where(k_pos > q_pos, _MASK_VALUE, s)

        m = jnp.max(s, axis=-1, keepdims=True)
        p = jnp.exp(s - m)
        m_scr[...] = m
        l_scr[...] = jnp.sum(p, axis=-1, keepdims=True)
        acc_scr[...] = jnp.dot(p.astype(v.dtype), v,
                               preferred_element_type=jnp.float32)

    @pl.when(ki < qi)
    def _offdiag_step():
        # Strictly below the diagonal: fully unmasked (no iota/compare/select), and
        # K|V come from the VMEM cache filled at row ki's diagonal step — no redundant
        # projection MXU work, no redundant HBM fetch of x's kv rows.
        row0 = pl.multiple_of(ki * tile, tile)
        k = k_scr[pl.ds(row0, tile), :]
        v = v_scr[pl.ds(row0, tile), :]
        s = lax.dot_general(q_scr[...], k,
                            dimension_numbers=(((1,), (1,)), ((), ())),
                            preferred_element_type=jnp.float32)
        m_prev = m_scr[...]
        m_new = jnp.maximum(m_prev, jnp.max(s, axis=-1, keepdims=True))
        alpha = jnp.exp(m_prev - m_new)
        p = jnp.exp(s - m_new)
        m_scr[...] = m_new
        l_scr[...] = alpha * l_scr[...] + jnp.sum(p, axis=-1, keepdims=True)
        acc_scr[...] = alpha * acc_scr[...] + jnp.dot(
            p.astype(v.dtype), v, preferred_element_type=jnp.float32)

    @pl.when(ki == 0)
    def _finalize():
        # ki == 0 is the last kv step of every q row; deferred normalization with the
        # EUP approximate reciprocal (co-issues on the EUP slot).
        inv_l = pl.reciprocal(l_scr[...], approx=True)
        o_ref[...] = (acc_scr[...] * inv_l).astype(o_ref.dtype)


def causal_attention_pallas(x, w_query, w_key, w_value, *,
                            block=512, compute_dtype=None):
    """Causal self-attention forward (dropout p=0.0, eval semantics).

    x: (B, T, d_in); w_*: nn.Linear weights of shape (d_out, d_in).
    compute_dtype: MXU input dtype. Defaults to bfloat16 for float32 inputs (full-rate
    MXU, half the DMA bytes); softmax math is always float32 and the output dtype is
    x.dtype. Pass jnp.float32 for closest parity with the f32 PyTorch reference.
    """
    B, T, d_in = x.shape
    d_out = w_query.shape[0]
    if compute_dtype is None:
        compute_dtype = jnp.bfloat16 if x.dtype == jnp.float32 else x.dtype

    d_pad = _round_up(d_out, 128)                            # lane-dense head dim
    tile = _round_up(max(8, min(block, _round_up(T, 8))), 8)  # tq == tk
    t_pad = _round_up(T, tile)
    nq = t_pad // tile

    # nn.Linear computes x @ W.T; fold 1/sqrt(d_out) into W_query; zero-pad the head
    # dim (zero columns are inert for q@k^T and attn@v); fuse Q|K|V into one weight.
    scale = 1.0 / math.sqrt(d_out)

    def pad_head(w):
        return jnp.pad(w, ((0, 0), (0, d_pad - d_out)))

    wqkv = jnp.concatenate(
        [pad_head(w_query.T * scale), pad_head(w_key.T), pad_head(w_value.T)],
        axis=1).astype(compute_dtype)

    xp = x.astype(compute_dtype)
    if t_pad != T:
        # Padded keys are always causally masked for valid queries (their positions
        # exceed every valid query position) and padded query rows are sliced off.
        xp = jnp.pad(xp, ((0, 0), (0, t_pad - T), (0, 0)))

    # Flat lower-triangular grid: only live (qi, ki <= qi) tiles are scheduled, so no
    # pipeline-step overhead is paid for tiles above the diagonal.  Within a q row,
    # ki runs qi, qi-1, ..., 0: diagonal first (projection + cache fill + mask + state
    # init on one step), ki == 0 last (finalize).
    qi_idx, ki_idx = [], []
    for q_i in range(nq):
        for k_i in range(q_i, -1, -1):
            qi_idx.append(q_i)
            ki_idx.append(k_i)
    qi_tbl = jnp.asarray(qi_idx, dtype=jnp.int32)
    ki_tbl = jnp.asarray(ki_idx, dtype=jnp.int32)
    n_steps = len(qi_idx)

    kernel = functools.partial(_flash_causal_kernel, d_pad=d_pad, tile=tile)

    grid_spec = pltpu.PrefetchScalarGridSpec(
        num_scalar_prefetch=2,                     # qi / ki lookup tables -> SMEM
        grid=(B, n_steps),
        in_specs=[
            # q-row tile of x; index constant across a row's kv steps -> one DMA/row.
            pl.BlockSpec((None, tile, d_in), lambda b, t, qi, ki: (b, qi[t], 0)),
            # Fused, padded QKV weights: constant index -> fetched once.
            # TODO(synk): pipeline_mode=pl.Buffered(1) would drop the second weight
            # buffer (matters on v7x's 64 MiB VMEM when d_in is large).
            pl.BlockSpec((d_in, 3 * d_pad), lambda b, t, qi, ki: (0, 0)),
        ],
        out_specs=pl.BlockSpec((None, tile, d_pad),
                               lambda b, t, qi, ki: (b, qi[t], 0)),
        scratch_shapes=[
            pltpu.VMEM((tile, d_pad), compute_dtype),    # Q tile
            pltpu.VMEM((t_pad, d_pad), compute_dtype),   # K cache (whole sequence)
            pltpu.VMEM((t_pad, d_pad), compute_dtype),   # V cache (whole sequence)
            pltpu.VMEM((tile, 1), jnp.float32),          # running max m
            pltpu.VMEM((tile, 1), jnp.float32),          # running denom l
            pltpu.VMEM((tile, d_pad), jnp.float32),      # output accumulator
        ],
    )

    # Explicit VMEM budget (v7x: 64 MiB/TC physical, ~32 MiB default scoped limit).
    isz = np.dtype(compute_dtype).itemsize
    osz = np.dtype(x.dtype).itemsize
    vmem_need = (2 * tile * d_in * isz               # x tile, double-buffered
                 + 2 * d_in * 3 * d_pad * isz        # fused weights
                 + 2 * tile * d_pad * osz            # output tile, double-buffered
                 + tile * d_pad * isz                # Q scratch
                 + 2 * t_pad * d_pad * isz           # K/V caches
                 + tile * d_pad * 4 + 2 * tile * 4   # acc, m, l (f32)
                 + 3 * tile * tile * 4)              # s/p staging headroom (f32)
    vmem_limit = int(min(128 * 2 ** 20, max(32 * 2 ** 20, 2 * vmem_need)))

    out = pl.pallas_call(
        kernel,
        out_shape=jax.ShapeDtypeStruct((B, t_pad, d_pad), x.dtype),
        grid_spec=grid_spec,
        compiler_params=pltpu.CompilerParams(
            # Batch axis "parallel": shards across v7x's two TensorCores when B >= 2
            # (inert on single-core v5e/v6e).  The triangular step axis carries the
            # online-softmax / KV-cache state and must stay sequential.
            dimension_semantics=("parallel", "arbitrary"),
            vmem_limit_bytes=vmem_limit),
    )(qi_tbl, ki_tbl, xp, wqkv)

    return out[:, :T, :d_out]


def causal_attention_ref(x, w_query, w_key, w_value):
    q = x @ w_query.T
    k = x @ w_key.T
    v = x @ w_value.T
    scores = jnp.einsum("btd,bsd->bts", q, k)
    T = x.shape[1]
    mask = jnp.triu(jnp.ones((T, T), dtype=bool), k=1)
    scores = jnp.where(mask[None], -jnp.inf, scores)
    w = jax.nn.softmax(scores / math.sqrt(k.shape[-1]), axis=-1)
    return w @ v


if __name__ == "__main__":
    # Shapes implied by the module: context_length = 6, d_in = 3, d_out = 2, batch = 2.
    B, T, d_in, d_out = 2, 6, 3, 2

    key = jax.random.PRNGKey(0)
    kq, kk, kv, k2x, k2q, k2k, k2v = jax.random.split(key, 7)

    base = jnp.array(
        [[0.43, 0.15, 0.89],
         [0.55, 0.87, 0.66],
         [0.57, 0.85, 0.64],
         [0.22, 0.58, 0.33],
         [0.77, 0.25, 0.10],
         [0.05, 0.80, 0.55]], dtype=jnp.float32)
    x = jnp.stack([base, base], axis=0)                          # (B, T, d_in)

    w_query = jax.random.uniform(kq, (d_out, d_in), jnp.float32, -0.5, 0.5)
    w_key = jax.random.uniform(kk, (d_out, d_in), jnp.float32, -0.5, 0.5)
    w_value = jax.random.uniform(kv, (d_out, d_in), jnp.float32, -0.5, 0.5)

    ref = causal_attention_ref(x, w_query, w_key, w_value)

    # f32 compute path: tight parity with the PyTorch reference.
    out_f32 = jax.block_until_ready(
        causal_attention_pallas(x, w_query, w_key, w_value,
                                compute_dtype=jnp.float32))
    assert out_f32.shape == (B, T, d_out)
    assert jnp.allclose(out_f32, ref, atol=5e-3, rtol=5e-3), "f32 mismatch (toy)"

    # Default (bf16 MXU inputs): looser tolerance, same semantics.
    out_bf16 = jax.block_until_ready(
        causal_attention_pallas(x, w_query, w_key, w_value))
    assert jnp.allclose(out_bf16, ref, atol=2e-2, rtol=2e-2), "bf16 mismatch (toy)"

    # Second config forces multiple q/kv tiles to exercise the triangular grid, the
    # VMEM KV cache, the diagonal-only masking, and the online-softmax accumulation.
    B2, T2, din2, dout2 = 2, 24, 8, 16
    x2 = jax.random.normal(k2x, (B2, T2, din2), jnp.float32)
    wq2 = jax.random.uniform(k2q, (dout2, din2), jnp.float32, -0.5, 0.5)
    wk2 = jax.random.uniform(k2k, (dout2, din2), jnp.float32, -0.5, 0.5)
    wv2 = jax.random.uniform(k2v, (dout2, din2), jnp.float32, -0.5, 0.5)

    ref2 = causal_attention_ref(x2, wq2, wk2, wv2)

    out2_f32 = jax.block_until_ready(
        causal_attention_pallas(x2, wq2, wk2, wv2, block=8,
                                compute_dtype=jnp.float32))
    assert out2_f32.shape == (B2, T2, dout2)
    assert jnp.allclose(out2_f32, ref2, atol=5e-3, rtol=5e-3), "f32 mismatch (tiled)"

    out2_bf16 = jax.block_until_ready(
        causal_attention_pallas(x2, wq2, wk2, wv2, block=8))
    assert jnp.allclose(out2_bf16, ref2, atol=3e-2, rtol=3e-2), "bf16 mismatch (tiled)"

    print("KERNEL_OK")
</pallas_src>

<mosaic_0001>
module attributes {stable_mosaic.version = 11 : i64} {
  func.func @_flash_causal_kernel(%arg0: i32, %arg1: i32, %arg2: memref<1xi32, #tpu.memory_space<smem>>, %arg3: memref<1xi32, #tpu.memory_space<smem>>, %arg4: memref<1x8x3xf32, #tpu.memory_space<vmem>>, %arg5: memref<3x384xf32, #tpu.memory_space<vmem>>, %arg6: memref<1x8x128xf32, #tpu.memory_space<vmem>>, %arg7: memref<8x128xf32, #tpu.memory_space<vmem>>, %arg8: memref<8x128xf32, #tpu.memory_space<vmem>>, %arg9: memref<8x128xf32, #tpu.memory_space<vmem>>, %arg10: memref<8x1xf32, #tpu.memory_space<vmem>>, %arg11: memref<8x1xf32, #tpu.memory_space<vmem>>, %arg12: memref<8x128xf32, #tpu.memory_space<vmem>>) attributes {dimension_semantics = [#tpu.dimension_semantics<parallel>, #tpu.dimension_semantics<arbitrary>], iteration_bounds = array<i64: 2, 1>, scalar_prefetch = 2 : i64, scratch_operands = 6 : i64, tpu.core_type = #tpu.core_type<tc>, window_params = [{transform_indices = @transform_0, window_bounds = array<i64: 1, 8, 3>}, {pipeline_mode = #tpu.pipeline_mode<synchronous>, transform_indices = @transform_1, window_bounds = array<i64: 3, 384>}, {transform_indices = @transform_2, window_bounds = array<i64: 1, 8, 128>}]} {
    %0 = arith.index_cast %arg1 : i32 to index
    %1 = memref.load %arg2[%0] : memref<1xi32, #tpu.memory_space<smem>>
    %2 = arith.index_cast %arg1 : i32 to index
    %3 = memref.load %arg3[%2] : memref<1xi32, #tpu.memory_space<smem>>
    %4 = arith.cmpi eq, %3, %1 : i32
    %5 = arith.extui %4 : i1 to i32
    %c0_i32 = arith.constant 0 : i32
    %6 = arith.cmpi ne, %5, %c0_i32 : i32
    scf.if %6 {
      %c0 = arith.constant 0 : index
      %c0_3 = arith.constant 0 : index
      %c0_4 = arith.constant 0 : index
      %13 = vector.load %arg4[%c0, %c0_3, %c0_4] : memref<1x8x3xf32, #tpu.memory_space<vmem>>, vector<1x8x3xf32>
      %14 = vector.shape_cast %13 : vector<1x8x3xf32> to vector<8x3xf32>
      %c0_5 = arith.constant 0 : index
      %c0_6 = arith.constant 0 : index
      %15 = vector.load %arg5[%c0_5, %c0_6] : memref<3x384xf32, #tpu.memory_space<vmem>>, vector<3x384xf32>
      %cst = arith.constant dense<0.000000e+00> : vector<8x384xf32>
      %16 = tpu.matmul %14, %15, %cst {dimension_numbers = #tpu.dot_dimension_numbers<[1], [0], [0], [1], [0, 0, 1, 1], [], []>} : vector<8x3xf32>, vector<3x384xf32>, vector<8x384xf32> -> vector<8x384xf32>
      %17 = vector.extract_strided_slice %16 {offsets = [0, 0], sizes = [8, 128], strides = [1, 1]} : vector<8x384xf32> to vector<8x128xf32>
      %18 = vector.extract_strided_slice %16 {offsets = [0, 128], sizes = [8, 128], strides = [1, 1]} : vector<8x384xf32> to vector<8x128xf32>
      %19 = vector.extract_strided_slice %16 {offsets = [0, 256], sizes = [8, 128], strides = [1, 1]} : vector<8x384xf32> to vector<8x128xf32>
      %c0_7 = arith.constant 0 : index
      %c0_8 = arith.constant 0 : index
      %20 = vector.load %arg7[%c0_7, %c0_8] : memref<8x128xf32, #tpu.memory_space<vmem>>, vector<8x128xf32>
      tpu.vector_store %arg7[%c0_7, %c0_8], %17 {strides = array<i32>} : memref<8x128xf32, #tpu.memory_space<vmem>>, vector<8x128xf32>,
      %c8_i32 = arith.constant 8 : i32
      %21 = arith.muli %1, %c8_i32 : i32
      %22 = tpu.assume_multiple %21, 8 : i32
      %23 = arith.index_cast %22 : i32 to index
      %c0_9 = arith.constant 0 : index
      %24 = vector.load %arg8[%23, %c0_9] : memref<8x128xf32, #tpu.memory_space<vmem>>, vector<8x128xf32>
      tpu.vector_store %arg8[%23, %c0_9], %18 {strides = array<i32>} : memref<8x128xf32, #tpu.memory_space<vmem>>, vector<8x128xf32>,
      %25 = arith.index_cast %22 : i32 to index
      %c0_10 = arith.constant 0 : index
      %26 = vector.load %arg9[%25, %c0_10] : memref<8x128xf32, #tpu.memory_space<vmem>>, vector<8x128xf32>
      tpu.vector_store %arg9[%25, %c0_10], %19 {strides = array<i32>} : memref<8x128xf32, #tpu.memory_space<vmem>>, vector<8x128xf32>,
      %cst_11 = arith.constant dense<0.000000e+00> : vector<8x8xf32>
      %27 = tpu.matmul %17, %18, %cst_11 {dimension_numbers = #tpu.dot_dimension_numbers<[1], [1], [0], [0], [0, 0, 1, 0], [], []>} : vector<8x128xf32>, vector<8x128xf32>, vector<8x8xf32> -> vector<8x8xf32>
      %28 = tpu.iota {dimensions = array<i32: 0>} : vector<8x8xi32>
      %29 = tpu.iota {dimensions = array<i32: 1>} : vector<8x8xi32>
      %30 = arith.cmpi sgt, %29, %28 : vector<8x8xi32>
      %cst_12 = arith.constant -1.000000e+30 : f32
      %31 = vector.broadcast %cst_12 : f32 to vector<8x8xf32>
      %32 = arith.select %30, %31, %27 : vector<8x8xi1>, vector<8x8xf32>
      %cst_13 = arith.constant dense<0xFF800000> : vector<8xf32>
      %33 = vector.multi_reduction <maximumf>, %32, %cst_13 [1] : vector<8x8xf32> to vector<8xf32>
      %34 = vector.shape_cast %33 : vector<8xf32> to vector<8x1xf32>
      %35 = vector.broadcast %34 : vector<8x1xf32> to vector<8x8xf32>
      %36 = arith.subf %32, %35 : vector<8x8xf32>
      %37 = math.exp %36 : vector<8x8xf32>
      %c0_14 = arith.constant 0 : index
      %c0_15 = arith.constant 0 : index
      %38 = vector.load %arg10[%c0_14, %c0_15] : memref<8x1xf32, #tpu.memory_space<vmem>>, vector<8x1xf32>
      tpu.vector_store %arg10[%c0_14, %c0_15], %34 {strides = array<i32>} : memref<8x1xf32, #tpu.memory_space<vmem>>, vector<8x1xf32>,
      %cst_16 = arith.constant dense<0.000000e+00> : vector<8xf32>
      %39 = vector.multi_reduction <add>, %37, %cst_16 [1] : vector<8x8xf32> to vector<8xf32>
      %40 = vector.shape_cast %39 : vector<8xf32> to vector<8x1xf32>
      %c0_17 = arith.constant 0 : index
      %c0_18 = arith.constant 0 : index
      %41 = vector.load %arg11[%c0_17, %c0_18] : memref<8x1xf32, #tpu.memory_space<vmem>>, vector<8x1xf32>
      tpu.vector_store %arg11[%c0_17, %c0_18], %40 {strides = array<i32>} : memref<8x1xf32, #tpu.memory_space<vmem>>, vector<8x1xf32>,
      %cst_19 = arith.constant dense<0.000000e+00> : vector<8x128xf32>
      %42 = tpu.matmul %37, %19, %cst_19 {dimension_numbers = #tpu.dot_dimension_numbers<[1], [0], [0], [1], [0, 0, 1, 1], [], []>} : vector<8x8xf32>, vector<8x128xf32>, vector<8x128xf32> -> vector<8x128xf32>
      %c0_20 = arith.constant 0 : index
      %c0_21 = arith.constant 0 : index
      %43 = vector.load %arg12[%c0_20, %c0_21] : memref<8x128xf32, #tpu.memory_space<vmem>>, vector<8x128xf32>
      tpu.vector_store %arg12[%c0_20, %c0_21], %42 {strides = array<i32>} : memref<8x128xf32, #tpu.memory_space<vmem>>, vector<8x128xf32>,
    } else {
    }
    %7 = arith.cmpi slt, %3, %1 : i32
    %8 = arith.extui %7 : i1 to i32
    %c0_i32_0 = arith.constant 0 : i32
    %9 = arith.cmpi ne, %8, %c0_i32_0 : i32
    scf.if %9 {
      %c8_i32 = arith.constant 8 : i32
      %13 = arith.muli %3, %c8_i32 : i32
      %14 = tpu.assume_multiple %13, 8 : i32
      %15 = arith.index_cast %14 : i32 to index
      %c0 = arith.constant 0 : index
      %16 = vector.load %arg8[%15, %c0] : memref<8x128xf32, #tpu.memory_space<vmem>>, vector<8x128xf32>
      %17 = arith.index_cast %14 : i32 to index
      %c0_3 = arith.constant 0 : index
      %18 = vector.load %arg9[%17, %c0_3] : memref<8x128xf32, #tpu.memory_space<vmem>>, vector<8x128xf32>
      %c0_4 = arith.constant 0 : index
      %c0_5 = arith.constant 0 : index
      %19 = vector.load %arg7[%c0_4, %c0_5] : memref<8x128xf32, #tpu.memory_space<vmem>>, vector<8x128xf32>
      %cst = arith.constant dense<0.000000e+00> : vector<8x8xf32>
      %20 = tpu.matmul %19, %16, %cst {dimension_numbers = #tpu.dot_dimension_numbers<[1], [1], [0], [0], [0, 0, 1, 0], [], []>} : vector<8x128xf32>, vector<8x128xf32>, vector<8x8xf32> -> vector<8x8xf32>
      %c0_6 = arith.constant 0 : index
      %c0_7 = arith.constant 0 : index
      %21 = vector.load %arg10[%c0_6, %c0_7] : memref<8x1xf32, #tpu.memory_space<vmem>>, vector<8x1xf32>
      %cst_8 = arith.constant dense<0xFF800000> : vector<8xf32>
      %22 = vector.multi_reduction <maximumf>, %20, %cst_8 [1] : vector<8x8xf32> to vector<8xf32>
      %23 = vector.shape_cast %22 : vector<8xf32> to vector<8x1xf32>
      %24 = arith.maximumf %21, %23 : vector<8x1xf32>
      %25 = arith.subf %21, %24 : vector<8x1xf32>
      %26 = math.exp %25 : vector<8x1xf32>
      %27 = vector.broadcast %24 : vector<8x1xf32> to vector<8x8xf32>
      %28 = arith.subf %20, %27 : vector<8x8xf32>
      %29 = math.exp %28 : vector<8x8xf32>
      %c0_9 = arith.constant 0 : index
      %c0_10 = arith.constant 0 : index
      %30 = vector.load %arg10[%c0_9, %c0_10] : memref<8x1xf32, #tpu.memory_space<vmem>>, vector<8x1xf32>
      tpu.vector_store %arg10[%c0_9, %c0_10], %24 {strides = array<i32>} : memref<8x1xf32, #tpu.memory_space<vmem>>, vector<8x1xf32>,
      %c0_11 = arith.constant 0 : index
      %c0_12 = arith.constant 0 : index
      %31 = vector.load %arg11[%c0_11, %c0_12] : memref<8x1xf32, #tpu.memory_space<vmem>>, vector<8x1xf32>
      %32 = arith.mulf %26, %31 : vector<8x1xf32>
      %cst_13 = arith.constant dense<0.000000e+00> : vector<8xf32>
      %33 = vector.multi_reduction <add>, %29, %cst_13 [1] : vector<8x8xf32> to vector<8xf32>
      %34 = vector.shape_cast %33 : vector<8xf32> to vector<8x1xf32>
      %35 = arith.addf %32, %34 : vector<8x1xf32>
      %c0_14 = arith.constant 0 : index
      %c0_15 = arith.constant 0 : index
      %36 = vector.load %arg11[%c0_14, %c0_15] : memref<8x1xf32, #tpu.memory_space<vmem>>, vector<8x1xf32>
      tpu.vector_store %arg11[%c0_14, %c0_15], %35 {strides = array<i32>} : memref<8x1xf32, #tpu.memory_space<vmem>>, vector<8x1xf32>,
      %c0_16 = arith.constant 0 : index
      %c0_17 = arith.constant 0 : index
      %37 = vector.load %arg12[%c0_16, %c0_17] : memref<8x128xf32, #tpu.memory_space<vmem>>, vector<8x128xf32>
      %38 = vector.broadcast %26 : vector<8x1xf32> to vector<8x128xf32>
      %39 = arith.mulf %38, %37 : vector<8x128xf32>
      %cst_18 = arith.constant dense<0.000000e+00> : vector<8x128xf32>
      %40 = tpu.matmul %29, %18, %cst_18 {dimension_numbers = #tpu.dot_dimension_numbers<[1], [0], [0], [1], [0, 0, 1, 1], [], []>} : vector<8x8xf32>, vector<8x128xf32>, vector<8x128xf32> -> vector<8x128xf32>
      %41 = arith.addf %39, %40 : vector<8x128xf32>
      %c0_19 = arith.constant 0 : index
      %c0_20 = arith.constant 0 : index
      %42 = vector.load %arg12[%c0_19, %c0_20] : memref<8x128xf32, #tpu.memory_space<vmem>>, vector<8x128xf32>
      tpu.vector_store %arg12[%c0_19, %c0_20], %41 {strides = array<i32>} : memref<8x128xf32, #tpu.memory_space<vmem>>, vector<8x128xf32>,
    } else {
    }
    %c0_i32_1 = arith.constant 0 : i32
    %10 = arith.cmpi eq, %3, %c0_i32_1 : i32
    %11 = arith.extui %10 : i1 to i32
    %c0_i32_2 = arith.constant 0 : i32
    %12 = arith.cmpi ne, %11, %c0_i32_2 : i32
    scf.if %12 {
      %c0 = arith.constant 0 : index
      %c0_3 = arith.constant 0 : index
      %13 = vector.load %arg11[%c0, %c0_3] : memref<8x1xf32, #tpu.memory_space<vmem>>, vector<8x1xf32>
      %14 = tpu.reciprocal %13 {approx = true} : vector<8x1xf32> -> vector<8x1xf32>
      %c0_4 = arith.constant 0 : index
      %c0_5 = arith.constant 0 : index
      %15 = vector.load %arg12[%c0_4, %c0_5] : memref<8x128xf32, #tpu.memory_space<vmem>>, vector<8x128xf32>
      %16 = vector.broadcast %14 : vector<8x1xf32> to vector<8x128xf32>
      %17 = arith.mulf %15, %16 : vector<8x128xf32>
      %c0_6 = arith.constant 0 : index
      %c0_7 = arith.constant 0 : index
      %c0_8 = arith.constant 0 : index
      %18 = vector.load %arg6[%c0_6, %c0_7, %c0_8] : memref<1x8x128xf32, #tpu.memory_space<vmem>>, vector<1x8x128xf32>
      %19 = vector.shape_cast %18 : vector<1x8x128xf32> to vector<8x128xf32>
      %20 = vector.shape_cast %17 : vector<8x128xf32> to vector<1x8x128xf32>
      tpu.vector_store %arg6[%c0_6, %c0_7, %c0_8], %20 {strides = array<i32>} : memref<1x8x128xf32, #tpu.memory_space<vmem>>, vector<1x8x128xf32>,
    } else {
    }
    return
  }
  func.func @transform_0(%arg0: i32, %arg1: i32, %arg2: memref<1xi32, #tpu.memory_space<smem>>, %arg3: memref<1xi32, #tpu.memory_space<smem>>) -> (i32, i32, i32) {
    %0 = arith.index_cast %arg1 : i32 to index
    %1 = memref.load %arg2[%0] : memref<1xi32, #tpu.memory_space<smem>>
    %c0_i32 = arith.constant 0 : i32
    %c0_i32_0 = arith.constant 0 : i32
    return %arg0, %1, %c0_i32 : i32, i32, i32
  }
  func.func @transform_1(%arg0: i32, %arg1: i32, %arg2: memref<1xi32, #tpu.memory_space<smem>>, %arg3: memref<1xi32, #tpu.memory_space<smem>>) -> (i32, i32) {
    %c0_i32 = arith.constant 0 : i32
    %c0_i32_0 = arith.constant 0 : i32
    %c0_i32_1 = arith.constant 0 : i32
    return %c0_i32, %c0_i32_0 : i32, i32
  }
  func.func @transform_2(%arg0: i32, %arg1: i32, %arg2: memref<1xi32, #tpu.memory_space<smem>>, %arg3: memref<1xi32, #tpu.memory_space<smem>>) -> (i32, i32, i32) {
    %0 = arith.index_cast %arg1 : i32 to index
    %1 = memref.load %arg2[%0] : memref<1xi32, #tpu.memory_space<smem>>
    %c0_i32 = arith.constant 0 : i32
    %c0_i32_0 = arith.constant 0 : i32
    return %arg0, %1, %c0_i32 : i32, i32, i32
  }
}

</mosaic_0001>

<llo_original>
// kernel: tpu_custom_call.1
$region0: #{tpu_custom_call.1}
  #allocation0 [shape = 'u32[]', space=smem, size = 0x4, offset = 0x4, fixed_abs, tag = 'smem constant byte address 0x4 - core index']
  #allocation1 [shape = 'u32[144,128]{1,0:T(1,128)}', space=vmem, size = 0x12000, scoped, tag = 'internal scratch']
  #allocation2 [shape = 'f32[8,128]{1,0:T(8,128)}', space=vmem, size = 0x1000, scoped, tag = 'scratch operand']
  #allocation3 [shape = 'f32[8,128]{1,0:T(8,128)}', space=vmem, size = 0x1000, scoped, tag = 'scratch operand']
  #allocation4 [shape = 'f32[8,128]{1,0:T(8,128)}', space=vmem, size = 0x1000, scoped, tag = 'scratch operand']
  #allocation5 [shape = 'f32[8,1]{1,0:T(8,128)}', space=vmem, size = 0x1000, scoped, tag = 'scratch operand']
  #allocation6 [shape = 'f32[8,1]{1,0:T(8,128)}', space=vmem, size = 0x1000, scoped, tag = 'scratch operand']
  #allocation7 [shape = 'f32[8,128]{1,0:T(8,128)}', space=vmem, size = 0x1000, scoped, tag = 'scratch operand']
  #allocation8 [shape = 's32[1]{0}', space=sflag, size = 0x4, scoped, tag = 'scoped memory for tpu_custom_call.1']
  #allocation9 [shape = 's32[1]{0:T(128)S(6)}', space=smem, size = 0x200, scoped, tag = 'prefetched SMEM operand 0']
  #allocation10 [shape = 's32[1]{0:T(128)S(6)}', space=smem, size = 0x200, scoped, tag = 'prefetched SMEM operand 1']
  %s0 = inlined_call_operand.<no memory space> [shape: s32[1], index: 0, kind: input, shape index: {}]
  %s1 = inlined_call_operand.<no memory space> [shape: s32[1], index: 1, kind: input, shape index: {}]
  %s2 = inlined_call_operand.vmem [shape: f32[2,8,3], index: 2, kind: input, shape index: {}]
  %s3 = inlined_call_operand.vmem [shape: f32[3,384], index: 3, kind: input, shape index: {}]
  %s4 = inlined_call_operand.hbm [shape: f32[2,8,128], index: 4, kind: output, shape index: {}]
  %s5 = sld [smem:[#allocation0]]
  $region53: #{tpu_custom_call.1} parent=0
    _
  %s7 = ssub.s32 1, %s5
  %s8 = scalar_select 0, %s7, %s5
  %9 = sst [smem:[#allocation9]] %s0
  %10 = sst [smem:[#allocation10]] %s1
  $region1: #{tpu_custom_call.1} parent=0
    #allocation11 [shape = 'u8[8192]{0}', space=vmem, size = 0x2000, scoped, tag = 'output window, operand 0']
    #allocation12 [shape = 's32[2]{0}', space=sflag, size = 0x8, scoped, tag = 'scoped memory for tpu_custom_call.1']
    %11 = vsyncpa [#allocation12], 0
    %s12 = scalar_lea.sflag [#allocation12], 1
    %13 = vsyncpa %s12, 0
    loop: start=0, step=1, limit=4
    $region2: #{tpu_custom_call.1} parent=1 // loop_pre_header
      _
    $region3: #{tpu_custom_call.1} parent=1 // loop_header
      %s15 = sphi 0, %s19
      %p16 = scmp.ge.s32.totalorder %s15, 4
      %s22 = sphi 0, %s34
      %s23 = sphi 0, %s30
      %s24 = sphi 0, %s22
      %s25 = sphi 0, %s23
      %s26 = sphi 0, %s24
      %s27 = sphi 0, %s25
      %s41 = sphi 0, %s43
      %s44 = sphi 0, %s41
      %s45 = sphi 0, %s44
      %s61 = sphi 0, %s45
      %s65 = sphi 0, %s65
      %s67 = sphi 0, %s65
      %s68 = sphi 0, %s67
      %s82 = sphi 0, %s68
      %s92 = sphi 0, %s94
      %s95 = sphi 0, %s92
      %s96 = sphi 0, %s95
      %s112 = sphi 0, %s96
    $region4: #{tpu_custom_call.1} parent=1 // loop_header_branch
      %18 = sbr.rel (%p16) target = $region8
    $region5: #{tpu_custom_call.1} parent=1 // loop_body
      %s20 = ssub.s32 %s15, 1
      %s21 = ssub.s32 %s15, 2
      %s28 = sadd.s32 1, %s23
      %p29 = scmp.ge.s32.totalorder %s28, 1
      %s30 = scalar_select %p29, 0, %s28
      %s31 = sadd.s32 1, %s22
      %s32 = scalar_select %p29, %s31, %s22
      %p33 = scmp.ge.s32.totalorder %s32, 2
      %s34 = scalar_select %p33, 0, %s32
      %s35 = sld [smem:[#allocation9 + %s23]]
      %s36 = sld [smem:[#allocation9 + %s30]]
      %s37 = ssub.s32 %s22, %s34
      %s38 = ssub.s32 %s35, %s36
      %s39 = sor.u32 %s37, %s38
      %p40 = scmp.eq.s32.totalorder %s39, 0
      %s42 = sadd.s32 %s41, 1
      %s43 = scalar_select %p40, %s41, %s42
      %p46 = pneg %p40
      %p47 = scmp.eq.s32.totalorder %s15, 1
      %p48 = por %p46, %p47
      %p49 = scmp.ne.s32.totalorder %s41, %s44
      %p50 = scmp.eq.s32.totalorder %s15, 0
      %p51 = por %p49, %p50
      %p52 = scmp.ne.s32.totalorder %s41, %s44
      %p53 = scmp.eq.s32.totalorder %s20, 1
      %p54 = por %p52, %p53
      %p55 = scmp.ne.s32.totalorder %s44, %s45
      %p56 = scmp.eq.s32.totalorder %s20, 0
      %p57 = por %p55, %p56
      %p58 = scmp.ne.s32.totalorder %s44, %s45
      %p59 = scmp.eq.s32.totalorder %s21, 1
      %p60 = por %p58, %p59
      %p62 = scmp.ne.s32.totalorder %s45, %s61
      %p63 = scmp.eq.s32.totalorder %s21, 0
      %p64 = por %p62, %p63
      %s66 = sadd.s32 %s65, 1
      %p69 = scmp.eq.s32.totalorder %s15, 1
      %p70 = scmp.ne.s32.totalorder %s65, %s67
      %p71 = scmp.eq.s32.totalorder %s15, 0
      %p72 = por %p70, %p71
      %p73 = scmp.ne.s32.totalorder %s65, %s67
      %p74 = scmp.eq.s32.totalorder %s20, 1
      %p75 = por %p73, %p74
      %p76 = scmp.ne.s32.totalorder %s67, %s68
      %p77 = scmp.eq.s32.totalorder %s20, 0
      %p78 = por %p76, %p77
      %p79 = scmp.ne.s32.totalorder %s67, %s68
      %p80 = scmp.eq.s32.totalorder %s21, 1
      %p81 = por %p79, %p80
      %p83 = scmp.ne.s32.totalorder %s68, %s82
      %p84 = scmp.eq.s32.totalorder %s21, 0
      %p85 = por %p83, %p84
      %s86 = sld [smem:[#allocation9 + %s23]]
      %s87 = sld [smem:[#allocation9 + %s30]]
      %s88 = ssub.s32 %s22, %s34
      %s89 = ssub.s32 %s86, %s87
      %s90 = sor.u32 %s88, %s89
      %p91 = scmp.eq.s32.totalorder %s90, 0
      %s93 = sadd.s32 %s92, 1
      %s94 = scalar_select %p91, %s92, %s93
      %p97 = pneg %p91
      %p98 = scmp.eq.s32.totalorder %s15, 1
      %p99 = por %p97, %p98
      %p100 = scmp.ne.s32.totalorder %s92, %s95
      %p101 = scmp.eq.s32.totalorder %s15, 0
      %p102 = por %p100, %p101
      %p103 = scmp.ne.s32.totalorder %s92, %s95
      %p104 = scmp.eq.s32.totalorder %s20, 1
      %p105 = por %p103, %p104
      %p106 = scmp.ne.s32.totalorder %s95, %s96
      %p107 = scmp.eq.s32.totalorder %s20, 0
      %p108 = por %p106, %p107
      %p109 = scmp.ne.s32.totalorder %s95, %s96
      %p110 = scmp.eq.s32.totalorder %s21, 1
      %p111 = por %p109, %p110
      %p113 = scmp.ne.s32.totalorder %s96, %s112
      %p114 = scmp.eq.s32.totalorder %s21, 0
      %p115 = por %p113, %p114
      %p116 = scmp.le.s32.totalorder 1, %s15
      %p117 = scmp.lt.s32.totalorder %s15, 3
      %p118 = pnand %p116, %p117
      %p119 = pneg %p118
      // Predicated region
      $region9: #{tpu_custom_call.1} parent=5 // pred_check
        _
      $region10: #{tpu_custom_call.1} parent=5 // pred_check_branch
        %121 = sbr.rel (%p118) target = $region12
      $region11: #{tpu_custom_call.1} parent=5 // pred_region
        %s122 = ssub.s32 %s15, 1
        // Predicated region
        $region13: #{tpu_custom_call.1} parent=11 // pred_check
          %p123 = pneg %p78
        $region14: #{tpu_custom_call.1} parent=11 // pred_check_branch
          %125 = sbr.rel (%p123) target = $region16
        $region15: #{tpu_custom_call.1} parent=11 // pred_region
          _
        $region16: #{tpu_custom_call.1} parent=11 // pred_fallthru
          _
      $region12: #{tpu_custom_call.1} parent=5 // pred_fallthru
        _
      %p126 = scmp.lt.s32.totalorder %s15, 2
      // Predicated region
      $region17: #{tpu_custom_call.1} parent=5 // pred_check
        %p127 = pneg %p126
      $region18: #{tpu_custom_call.1} parent=5 // pred_check_branch
        %129 = sbr.rel (%p127) target = $region20
      $region19: #{tpu_custom_call.1} parent=5 // pred_region
        // Predicated region
        $region21: #{tpu_custom_call.1} parent=19 // pred_check
          %p130 = pneg %p51
        $region22: #{tpu_custom_call.1} parent=19 // pred_check_branch
          %132 = sbr.rel (%p130) target = $region24
        $region23: #{tpu_custom_call.1} parent=19 // pred_region
          %s133 = sld [smem:[#allocation9 + %s23]]
          %p134 = scmp.lt.s32.totalorder %s22, 1
          %s135 = scalar_select %p134, %s22, 1
          %p136 = scmp.lt.s32.totalorder %s133, 0
          %s137 = scalar_select %p136, %s133, 0
          %s138 = sadd.s32 %s137, %s135
          %s139 = smul.addr %s138, 8
          %s140 = scalar_lea.vmem %s2, %s139
          %s141 = sld [smem:[#allocation9 + %s23]]
        $region24: #{tpu_custom_call.1} parent=19 // pred_fallthru
          _
      $region20: #{tpu_custom_call.1} parent=5 // pred_fallthru
        _
      %p142 = scmp.le.s32.totalorder 1, %s15
      %p143 = scmp.lt.s32.totalorder %s15, 3
      %p144 = pnand %p142, %p143
      %p145 = pneg %p144
      // Predicated region
      $region25: #{tpu_custom_call.1} parent=5 // pred_check
        _
      $region26: #{tpu_custom_call.1} parent=5 // pred_check_branch
        %147 = sbr.rel (%p144) target = $region28
      $region27: #{tpu_custom_call.1} parent=5 // pred_region
        %s148 = ssub.s32 %s15, 1
        %s149 = sld [smem:[#allocation9 + %s25]]
        %p150 = scmp.lt.s32.totalorder %s24, 1
        %s151 = scalar_select %p150, %s24, 1
        %p152 = scmp.lt.s32.totalorder %s149, 0
        %s153 = scalar_select %p152, %s149, 0
        %s154 = sadd.s32 %s153, %s151
        %s155 = smul.addr %s154, 8
        %s156 = scalar_lea.vmem %s2, %s155
        %p157 = pneg %p57
        %p158 = pneg %p54
        %p159 = pneg %p78
        %p160 = pneg %p75
        %p161 = pneg %p108
        %p162 = pneg %p105
        %s163 = sand.u32 %s95, 1
        %s164 = scalar_lea.sflag [#allocation12], %s163
        %s165 = sand.u32 %s95, 1
        %s166 = smul.addr %s165, 8
        %s167 = scalar_lea.vmem [#allocation11], %s166
        %s168 = sld [smem:[#allocation9 + %s25]]
        %p169 = scmp.lt.s32.totalorder %s24, 1
        %s170 = scalar_select %p169, %s24, 1
        %p171 = scmp.lt.s32.totalorder %s168, 0
        %s172 = scalar_select %p171, %s168, 0
        %s173 = sadd.s32 %s172, %s170
        %s174 = smul.addr %s173, 8
        %s175 = scalar_lea.vmem %s2, %s174
        %s176 = sld [smem:[#allocation9 + %s25]]
        %s177 = sld [smem:[#allocation9 + %s25]]
        %s178 = sld [smem:[#allocation9 + %s25]]
        %s179 = sld [smem:[#allocation10 + %s25]]
        %p180 = scmp.eq.s32.totalorder %s179, %s178
        // Predicated region
        $region29: #{tpu_custom_call.1} parent=27 // pred_check
          %p181 = pneg %p180
        $region30: #{tpu_custom_call.1} parent=27 // pred_check_branch
          %183 = sbr.rel (%p181) target = $region32
        $region31: #{tpu_custom_call.1} parent=27 // pred_region
          %v184 = vld [vmem:[%s175] sm:$0xff]
          %v185 = vld [vmem:[%s3] sm:$0x77]
          %v186 = vld [vmem:[%s3 + $0x8] sm:$0x7]
          %v189 = vcombine.high %v185, %v185
          %vm190 = vcmask 23552
          %v192 = vsel %vm190, %v184, 0
          %vm194 = vcmask 1042432
          %v195 = vsel %vm194, %v185, 0
          %v197 = vsel %vm194, %v189, 0
          %v199 = vsel %vm194, %v186, 0
          %201 = vmatprep.subr.mxu0 %v197
          %202 = vmatpush1.msra.mxu0 %v195
          %203 = vmatprep.subr.mxu0 0.0
          %204 = vmatpush1.msra.mxu0 0.0
          %205 = vmatprep.subr.mxu0 0.0
          %206 = vmatpush1.msra.mxu0 0.0
          %207 = vmatprep.subr.mxu0 0.0
          %208 = vmatpush1.msra.mxu0 0.0
          %209 = vmatprep.subr.mxu0 0.0
          %210 = vmatpush1.msra.mxu0 0.0
          %211 = vmatprep.subr.mxu0 0.0
          %212 = vmatpush1.msra.mxu0 0.0
          %213 = vmatprep.subr.mxu0 0.0
          %214 = vmatpush1.msra.mxu0 0.0
          %215 = vmatprep.subr.mxu0 0.0
          %216 = vmatpush1.msra.mxu0 0.0
          %217 = vmatprep.subr.mxu0 0.0
          %218 = vmatpush1.msra.mxu0 0.0
          %219 = vmatprep.subr.mxu0 0.0
          %220 = vmatpush1.msra.mxu0 0.0
          %221 = vmatprep.subr.mxu0 0.0
          %222 = vmatpush1.msra.mxu0 0.0
          %223 = vmatprep.subr.mxu0 0.0
          %224 = vmatpush1.msra.mxu0 0.0
          %225 = vmatprep.subr.mxu0 0.0
          %226 = vmatpush1.msra.mxu0 0.0
          %227 = vmatprep.subr.mxu0 0.0
          %228 = vmatpush1.msra.mxu0 0.0
          %229 = vmatprep.subr.mxu0 0.0
          %230 = vmatpush1.msra.mxu0 0.0
          %231 = vmatprep.subr.mxu0 0.0
          %232 = vmatpush1.msra.mxu0 0.0
          %233 = vmatprep.subr.mxu0 0.0
          %234 = vmatpush1.msra.mxu0 0.0
          %235 = vmatprep.subr.mxu0 0.0
          %236 = vmatpush1.msra.mxu0 0.0
          %237 = vmatprep.subr.mxu0 0.0
          %238 = vmatpush1.msra.mxu0 0.0
          %239 = vmatprep.subr.mxu0 0.0
          %240 = vmatpush1.msra.mxu0 0.0
          %241 = vmatprep.subr.mxu0 0.0
          %242 = vmatpush1.msra.mxu0 0.0
          %243 = vmatprep.subr.mxu0 0.0
          %244 = vmatpush1.msra.mxu0 0.0
          %245 = vmatprep.subr.mxu0 0.0
          %246 = vmatpush1.msra.mxu0 0.0
          %247 = vmatprep.subr.mxu0 0.0
          %248 = vmatpush1.msra.mxu0 0.0
          %249 = vmatprep.subr.mxu0 0.0
          %250 = vmatpush1.msra.mxu0 0.0
          %251 = vmatprep.subr.mxu0 0.0
          %252 = vmatpush1.msra.mxu0 0.0
          %253 = vmatprep.subr.mxu0 0.0
          %254 = vmatpush1.msra.mxu0 0.0
          %255 = vmatprep.subr.mxu0 0.0
          %256 = vmatpush1.msra.mxu0 0.0
          %257 = vmatprep.subr.mxu0 0.0
          %258 = vmatpush1.msra.mxu0 0.0
          %259 = vmatprep.subr.mxu0 0.0
          %260 = vmatpush1.msra.mxu0 0.0
          %261 = vmatprep.subr.mxu0 0.0
          %262 = vmatpush1.msra.mxu0 0.0
          %263 = vmatprep.subr.mxu0 0.0
          %264 = vmatpush1.msra.mxu0 0.0
          %265 = vmatprep.mubr.f32.mxu0 0.0
          %266 = vmatmul.mubr.f32.gmra.mrb[0].mxu0 %v192
          %v267 = vpop.f32.mrb[0].mxu0
          %v268 = vadd.f32 0.0, %v267
          %v269 = vpop.f32.mrb[0].mxu0
          %v270 = vadd.f32 0.0, %v269
          %271 = vdwg.mxu0
          %272 = vmatprep.subr.mxu0 0.0
          %273 = vmatpush1.msra.mxu0 %v199
          %274 = vmatprep.subr.mxu0 0.0
          %275 = vmatpush1.msra.mxu0 0.0
          %276 = vmatprep.subr.mxu0 0.0
          %277 = vmatpush1.msra.mxu0 0.0
          %278 = vmatprep.subr.mxu0 0.0
          %279 = vmatpush1.msra.mxu0 0.0
          %280 = vmatprep.subr.mxu0 0.0
          %281 = vmatpush1.msra.mxu0 0.0
          %282 = vmatprep.subr.mxu0 0.0
          %283 = vmatpush1.msra.mxu0 0.0
          %284 = vmatprep.subr.mxu0 0.0
          %285 = vmatpush1.msra.mxu0 0.0
          %286 = vmatprep.subr.mxu0 0.0
          %287 = vmatpush1.msra.mxu0 0.0
          %288 = vmatprep.subr.mxu0 0.0
          %289 = vmatpush1.msra.mxu0 0.0
          %290 = vmatprep.subr.mxu0 0.0
          %291 = vmatpush1.msra.mxu0 0.0
          %292 = vmatprep.subr.mxu0 0.0
          %293 = vmatpush1.msra.mxu0 0.0
          %294 = vmatprep.subr.mxu0 0.0
          %295 = vmatpush1.msra.mxu0 0.0
          %296 = vmatprep.subr.mxu0 0.0
          %297 = vmatpush1.msra.mxu0 0.0
          %298 = vmatprep.subr.mxu0 0.0
          %299 = vmatpush1.msra.mxu0 0.0
          %300 = vmatprep.subr.mxu0 0.0
          %301 = vmatpush1.msra.mxu0 0.0
          %302 = vmatprep.subr.mxu0 0.0
          %303 = vmatpush1.msra.mxu0 0.0
          %304 = vmatprep.subr.mxu0 0.0
          %305 = vmatpush1.msra.mxu0 0.0
          %306 = vmatprep.subr.mxu0 0.0
          %307 = vmatpush1.msra.mxu0 0.0
          %308 = vmatprep.subr.mxu0 0.0
          %309 = vmatpush1.msra.mxu0 0.0
          %310 = vmatprep.subr.mxu0 0.0
          %311 = vmatpush1.msra.mxu0 0.0
          %312 = vmatprep.subr.mxu0 0.0
          %313 = vmatpush1.msra.mxu0 0.0
          %314 = vmatprep.subr.mxu0 0.0
          %315 = vmatpush1.msra.mxu0 0.0
          %316 = vmatprep.subr.mxu0 0.0
          %317 = vmatpush1.msra.mxu0 0.0
          %318 = vmatprep.subr.mxu0 0.0
          %319 = vmatpush1.msra.mxu0 0.0
          %320 = vmatprep.subr.mxu0 0.0
          %321 = vmatpush1.msra.mxu0 0.0
          %322 = vmatprep.subr.mxu0 0.0
          %323 = vmatpush1.msra.mxu0 0.0
          %324 = vmatprep.subr.mxu0 0.0
          %325 = vmatpush1.msra.mxu0 0.0
          %326 = vmatprep.subr.mxu0 0.0
          %327 = vmatpush1.msra.mxu0 0.0
          %328 = vmatprep.subr.mxu0 0.0
          %329 = vmatpush1.msra.mxu0 0.0
          %330 = vmatprep.subr.mxu0 0.0
          %331 = vmatpush1.msra.mxu0 0.0
          %332 = vmatprep.subr.mxu0 0.0
          %333 = vmatpush1.msra.mxu0 0.0
          %334 = vmatprep.subr.mxu0 0.0
          %335 = vmatpush1.msra.mxu0 0.0
          %336 = vmatprep.mubr.f32.mxu0 0.0
          %337 = vmatmul.mubr.f32.gmra.mrb[0].mxu0 %v192
          %v338 = vpop.f32.mrb[0].mxu0
          %v339 = vadd.f32 0.0, %v338
          %v340 = vpop.f32.mrb[0].mxu0
          %341 = vdwg.mxu0
          %342 = vst [vmem:[#allocation2] sm:$0xff] %v268
          %s343 = smul.u32 %s178, 8
          %s344 = scalar_lea.vmem [#allocation3], %s343
          %345 = vst [vmem:[%s344] sm:$0xff] %v270
          %s346 = scalar_lea.vmem [#allocation4], %s343
          %347 = vst [vmem:[%s346] sm:$0xff] %v339
          %348 = vmatprep.subr.mxu0 0.0
          %349 = vmatpush1.xpose.msra.mxu0 %v270
          %350 = vmatprep.subr.mxu0 0.0
          %351 = vmatpush1.xpose.msra.mxu0 0.0
          %352 = vmatprep.subr.mxu0 0.0
          %353 = vmatpush1.xpose.msra.mxu0 0.0
          %354 = vmatprep.subr.mxu0 0.0
          %355 = vmatpush1.xpose.msra.mxu0 0.0
          %356 = vmatprep.subr.mxu0 0.0
          %357 = vmatpush1.xpose.msra.mxu0 0.0
          %358 = vmatprep.subr.mxu0 0.0
          %359 = vmatpush1.xpose.msra.mxu0 0.0
          %360 = vmatprep.subr.mxu0 0.0
          %361 = vmatpush1.xpose.msra.mxu0 0.0
          %362 = vmatprep.subr.mxu0 0.0
          %363 = vmatpush1.xpose.msra.mxu0 0.0
          %364 = vmatprep.subr.mxu0 0.0
          %365 = vmatpush1.xpose.msra.mxu0 0.0
          %366 = vmatprep.subr.mxu0 0.0
          %367 = vmatpush1.xpose.msra.mxu0 0.0
          %368 = vmatprep.subr.mxu0 0.0
          %369 = vmatpush1.xpose.msra.mxu0 0.0
          %370 = vmatprep.subr.mxu0 0.0
          %371 = vmatpush1.xpose.msra.mxu0 0.0
          %372 = vmatprep.subr.mxu0 0.0
          %373 = vmatpush1.xpose.msra.mxu0 0.0
          %374 = vmatprep.subr.mxu0 0.0
          %375 = vmatpush1.xpose.msra.mxu0 0.0
          %376 = vmatprep.subr.mxu0 0.0
          %377 = vmatpush1.xpose.msra.mxu0 0.0
          %378 = vmatprep.subr.mxu0 0.0
          %379 = vmatpush1.xpose.msra.mxu0 0.0
          %380 = vmatprep.subr.mxu0 0.0
          %381 = vmatpush1.xpose.msra.mxu0 0.0
          %382 = vmatprep.subr.mxu0 0.0
          %383 = vmatpush1.xpose.msra.mxu0 0.0
          %384 = vmatprep.subr.mxu0 0.0
          %385 = vmatpush1.xpose.msra.mxu0 0.0
          %386 = vmatprep.subr.mxu0 0.0
          %387 = vmatpush1.xpose.msra.mxu0 0.0
          %388 = vmatprep.subr.mxu0 0.0
          %389 = vmatpush1.xpose.msra.mxu0 0.0
          %390 = vmatprep.subr.mxu0 0.0
          %391 = vmatpush1.xpose.msra.mxu0 0.0
          %392 = vmatprep.subr.mxu0 0.0
          %393 = vmatpush1.xpose.msra.mxu0 0.0
          %394 = vmatprep.subr.mxu0 0.0
          %395 = vmatpush1.xpose.msra.mxu0 0.0
          %396 = vmatprep.subr.mxu0 0.0
          %397 = vmatpush1.xpose.msra.mxu0 0.0
          %398 = vmatprep.subr.mxu0 0.0
          %399 = vmatpush1.xpose.msra.mxu0 0.0
          %400 = vmatprep.subr.mxu0 0.0
          %401 = vmatpush1.xpose.msra.mxu0 0.0
          %402 = vmatprep.subr.mxu0 0.0
          %403 = vmatpush1.xpose.msra.mxu0 0.0
          %404 = vmatprep.subr.mxu0 0.0
          %405 = vmatpush1.xpose.msra.mxu0 0.0
          %406 = vmatprep.subr.mxu0 0.0
          %407 = vmatpush1.xpose.msra.mxu0 0.0
          %408 = vmatprep.subr.mxu0 0.0
          %409 = vmatpush1.xpose.msra.mxu0 0.0
          %410 = vmatprep.subr.mxu0 0.0
          %411 = vmatpush1.xpose.msra.mxu0 0.0
          %412 = vmatprep.mubr.f32.mxu0 0.0
          %413 = vmatmul.mubr.f32.gmra.mrb[0].mxu0 %v268
          %v414 = vpop.f32.mrb[0].mxu0
          %v415 = vadd.f32 0.0, %v414
          %v416 = vpop.f32.mrb[0].mxu0
          %417 = vdwg.mxu0
          %v418 = vlaneseq
          %v419 = vshrl.u32 %v418, 7
          %v420 = vlaneseq
          %v421 = vand.u32 %v420, 127
          %vm422 = vcmp.gt.s32.totalorder %v421, %v419
          %v423 = vsel %vm422, -1e+30, %v415
          %vm424 = vcmask 64512
          %v425 = vsel %vm424, %v423, -inf
          %426 = vmax.xlane.f32.xlu0 %v425
          %v427 = vpop.xlane.xlu0 %426
          %v428 = vsub.f32 %v423, %v427
          %v429 = vmul.f32 %v428, 1.442695
          %v430 = vpow.pop %v429
          %vm431 = vcmask 7168
          %432 = vst.msk [vmem:[#allocation5] sm:$0xff] %vm431, %v427
          %v433 = vsel %vm424, %v430, 0.0
          %434 = vadd.xlane.f32.xlu0 %v433
          %v435 = vpop.xlane.xlu0 %434
          %436 = vst.msk [vmem:[#allocation6] sm:$0xff] %vm431, %v435
          %v438 = vsel %vm424, %v430, 0
          %440 = vmatprep.subr.mxu0 0.0
          %441 = vmatpush1.msra.mxu0 %v339
          %442 = vmatprep.subr.mxu0 0.0
          %443 = vmatpush1.msra.mxu0 0.0
          %444 = vmatprep.subr.mxu0 0.0
          %445 = vmatpush1.msra.mxu0 0.0
          %446 = vmatprep.subr.mxu0 0.0
          %447 = vmatpush1.msra.mxu0 0.0
          %448 = vmatprep.subr.mxu0 0.0
          %449 = vmatpush1.msra.mxu0 0.0
          %450 = vmatprep.subr.mxu0 0.0
          %451 = vmatpush1.msra.mxu0 0.0
          %452 = vmatprep.subr.mxu0 0.0
          %453 = vmatpush1.msra.mxu0 0.0
          %454 = vmatprep.subr.mxu0 0.0
          %455 = vmatpush1.msra.mxu0 0.0
          %456 = vmatprep.subr.mxu0 0.0
          %457 = vmatpush1.msra.mxu0 0.0
          %458 = vmatprep.subr.mxu0 0.0
          %459 = vmatpush1.msra.mxu0 0.0
          %460 = vmatprep.subr.mxu0 0.0
          %461 = vmatpush1.msra.mxu0 0.0
          %462 = vmatprep.subr.mxu0 0.0
          %463 = vmatpush1.msra.mxu0 0.0
          %464 = vmatprep.subr.mxu0 0.0
          %465 = vmatpush1.msra.mxu0 0.0
          %466 = vmatprep.subr.mxu0 0.0
          %467 = vmatpush1.msra.mxu0 0.0
          %468 = vmatprep.subr.mxu0 0.0
          %469 = vmatpush1.msra.mxu0 0.0
          %470 = vmatprep.subr.mxu0 0.0
          %471 = vmatpush1.msra.mxu0 0.0
          %472 = vmatprep.subr.mxu0 0.0
          %473 = vmatpush1.msra.mxu0 0.0
          %474 = vmatprep.subr.mxu0 0.0
          %475 = vmatpush1.msra.mxu0 0.0
          %476 = vmatprep.subr.mxu0 0.0
          %477 = vmatpush1.msra.mxu0 0.0
          %478 = vmatprep.subr.mxu0 0.0
          %479 = vmatpush1.msra.mxu0 0.0
          %480 = vmatprep.subr.mxu0 0.0
          %481 = vmatpush1.msra.mxu0 0.0
          %482 = vmatprep.subr.mxu0 0.0
          %483 = vmatpush1.msra.mxu0 0.0
          %484 = vmatprep.subr.mxu0 0.0
          %485 = vmatpush1.msra.mxu0 0.0
          %486 = vmatprep.subr.mxu0 0.0
          %487 = vmatpush1.msra.mxu0 0.0
          %488 = vmatprep.subr.mxu0 0.0
          %489 = vmatpush1.msra.mxu0 0.0
          %490 = vmatprep.subr.mxu0 0.0
          %491 = vmatpush1.msra.mxu0 0.0
          %492 = vmatprep.subr.mxu0 0.0
          %493 = vmatpush1.msra.mxu0 0.0
          %494 = vmatprep.subr.mxu0 0.0
          %495 = vmatpush1.msra.mxu0 0.0
          %496 = vmatprep.subr.mxu0 0.0
          %497 = vmatpush1.msra.mxu0 0.0
          %498 = vmatprep.subr.mxu0 0.0
          %499 = vmatpush1.msra.mxu0 0.0
          %500 = vmatprep.subr.mxu0 0.0
          %501 = vmatpush1.msra.mxu0 0.0
          %502 = vmatprep.subr.mxu0 0.0
          %503 = vmatpush1.msra.mxu0 0.0
          %504 = vmatprep.mubr.f32.mxu0 0.0
          %505 = vmatmul.mubr.f32.gmra.mrb[0].mxu0 %v438
          %v506 = vpop.f32.mrb[0].mxu0
          %v507 = vadd.f32 0.0, %v506
          %v508 = vpop.f32.mrb[0].mxu0
          %509 = vdwg.mxu0
          %510 = vst [vmem:[#allocation7] sm:$0xff] %v507
        $region32: #{tpu_custom_call.1} parent=27 // pred_fallthru
          _
        %p511 = scmp.lt.s32.totalorder %s179, %s178
        // Predicated region
        $region33: #{tpu_custom_call.1} parent=27 // pred_check
          %p512 = pneg %p511
        $region34: #{tpu_custom_call.1} parent=27 // pred_check_branch
          %514 = sbr.rel (%p512) target = $region36
        $region35: #{tpu_custom_call.1} parent=27 // pred_region
          %s515 = smul.u32 %s179, 8
          %s516 = scalar_lea.vmem [#allocation3], %s515
          %v517 = vld [vmem:[%s516] sm:$0xff]
          %s518 = scalar_lea.vmem [#allocation4], %s515
          %v519 = vld [vmem:[%s518] sm:$0xff]
          %v520 = vld [vmem:[#allocation2] sm:$0xff]
          %521 = vmatprep.subr.mxu0 0.0
          %522 = vmatpush1.xpose.msra.mxu0 %v517
          %523 = vmatprep.subr.mxu0 0.0
          %524 = vmatpush1.xpose.msra.mxu0 0.0
          %525 = vmatprep.subr.mxu0 0.0
          %526 = vmatpush1.xpose.msra.mxu0 0.0
          %527 = vmatprep.subr.mxu0 0.0
          %528 = vmatpush1.xpose.msra.mxu0 0.0
          %529 = vmatprep.subr.mxu0 0.0
          %530 = vmatpush1.xpose.msra.mxu0 0.0
          %531 = vmatprep.subr.mxu0 0.0
          %532 = vmatpush1.xpose.msra.mxu0 0.0
          %533 = vmatprep.subr.mxu0 0.0
          %534 = vmatpush1.xpose.msra.mxu0 0.0
          %535 = vmatprep.subr.mxu0 0.0
          %536 = vmatpush1.xpose.msra.mxu0 0.0
          %537 = vmatprep.subr.mxu0 0.0
          %538 = vmatpush1.xpose.msra.mxu0 0.0
          %539 = vmatprep.subr.mxu0 0.0
          %540 = vmatpush1.xpose.msra.mxu0 0.0
          %541 = vmatprep.subr.mxu0 0.0
          %542 = vmatpush1.xpose.msra.mxu0 0.0
          %543 = vmatprep.subr.mxu0 0.0
          %544 = vmatpush1.xpose.msra.mxu0 0.0
          %545 = vmatprep.subr.mxu0 0.0
          %546 = vmatpush1.xpose.msra.mxu0 0.0
          %547 = vmatprep.subr.mxu0 0.0
          %548 = vmatpush1.xpose.msra.mxu0 0.0
          %549 = vmatprep.subr.mxu0 0.0
          %550 = vmatpush1.xpose.msra.mxu0 0.0
          %551 = vmatprep.subr.mxu0 0.0
          %552 = vmatpush1.xpose.msra.mxu0 0.0
          %553 = vmatprep.subr.mxu0 0.0
          %554 = vmatpush1.xpose.msra.mxu0 0.0
          %555 = vmatprep.subr.mxu0 0.0
          %556 = vmatpush1.xpose.msra.mxu0 0.0
          %557 = vmatprep.subr.mxu0 0.0
          %558 = vmatpush1.xpose.msra.mxu0 0.0
          %559 = vmatprep.subr.mxu0 0.0
          %560 = vmatpush1.xpose.msra.mxu0 0.0
          %561 = vmatprep.subr.mxu0 0.0
          %562 = vmatpush1.xpose.msra.mxu0 0.0
          %563 = vmatprep.subr.mxu0 0.0
          %564 = vmatpush1.xpose.msra.mxu0 0.0
          %565 = vmatprep.subr.mxu0 0.0
          %566 = vmatpush1.xpose.msra.mxu0 0.0
          %567 = vmatprep.subr.mxu0 0.0
          %568 = vmatpush1.xpose.msra.mxu0 0.0
          %569 = vmatprep.subr.mxu0 0.0
          %570 = vmatpush1.xpose.msra.mxu0 0.0
          %571 = vmatprep.subr.mxu0 0.0
          %572 = vmatpush1.xpose.msra.mxu0 0.0
          %573 = vmatprep.subr.mxu0 0.0
          %574 = vmatpush1.xpose.msra.mxu0 0.0
          %575 = vmatprep.subr.mxu0 0.0
          %576 = vmatpush1.xpose.msra.mxu0 0.0
          %577 = vmatprep.subr.mxu0 0.0
          %578 = vmatpush1.xpose.msra.mxu0 0.0
          %579 = vmatprep.subr.mxu0 0.0
          %580 = vmatpush1.xpose.msra.mxu0 0.0
          %581 = vmatprep.subr.mxu0 0.0
          %582 = vmatpush1.xpose.msra.mxu0 0.0
          %583 = vmatprep.subr.mxu0 0.0
          %584 = vmatpush1.xpose.msra.mxu0 0.0
          %585 = vmatprep.mubr.f32.mxu0 0.0
          %586 = vmatmul.mubr.f32.gmra.mrb[0].mxu0 %v520
          %v587 = vpop.f32.mrb[0].mxu0
          %v588 = vadd.f32 0.0, %v587
          %v589 = vpop.f32.mrb[0].mxu0
          %590 = vdwg.mxu0
          %v591 = vld [vmem:[#allocation5] sm:$0xff]
          %vm592 = vcmask 64512
          %v593 = vsel %vm592, %v588, -inf
          %594 = vmax.xlane.f32.xlu0 %v593
          %v595 = vpop.xlane.xlu0 %594
          %v596 = vmax.f32 %v591, %v595
          %v597 = vsub.f32 %v591, %v596
          %v598 = vmul.f32 %v597, 1.442695
          %v599 = vpow.pop %v598
          %601 = vset.pattern.permute.xlu0 0
          %602 = vperm.xlu0 %601, %v596
          %v603 = vpop.permute.xlu0 %602
          %v605 = vsub.f32 %v588, %v603
          %v606 = vmul.f32 %v605, 1.442695
          %v607 = vpow.pop %v606
          %vm608 = vcmask 7168
          %609 = vst.msk [vmem:[#allocation5] sm:$0xff] %vm608, %v596
          %v610 = vld [vmem:[#allocation6] sm:$0xff]
          %v611 = vmul.f32 %v599, %v610
          %v612 = vsel %vm592, %v607, 0.0
          %613 = vadd.xlane.f32.xlu0 %v612
          %v614 = vpop.xlane.xlu0 %613
          %v615 = vadd.f32 %v611, %v614
          %616 = vst.msk [vmem:[#allocation6] sm:$0xff] %vm608, %v615
          %v617 = vld [vmem:[#allocation7] sm:$0xff]
          %619 = vset.pattern.permute.xlu0 0
          %620 = vperm.xlu0 %619, %v599
          %v621 = vpop.permute.xlu0 %620
          %v623 = vmul.f32 %v621, %v617
          %v625 = vsel %vm592, %v607, 0
          %627 = vmatprep.subr.mxu0 0.0
          %628 = vmatpush1.msra.mxu0 %v519
          %629 = vmatprep.subr.mxu0 0.0
          %630 = vmatpush1.msra.mxu0 0.0
          %631 = vmatprep.subr.mxu0 0.0
          %632 = vmatpush1.msra.mxu0 0.0
          %633 = vmatprep.subr.mxu0 0.0
          %634 = vmatpush1.msra.mxu0 0.0
          %635 = vmatprep.subr.mxu0 0.0
          %636 = vmatpush1.msra.mxu0 0.0
          %637 = vmatprep.subr.mxu0 0.0
          %638 = vmatpush1.msra.mxu0 0.0
          %639 = vmatprep.subr.mxu0 0.0
          %640 = vmatpush1.msra.mxu0 0.0
          %641 = vmatprep.subr.mxu0 0.0
          %642 = vmatpush1.msra.mxu0 0.0
          %643 = vmatprep.subr.mxu0 0.0
          %644 = vmatpush1.msra.mxu0 0.0
          %645 = vmatprep.subr.mxu0 0.0
          %646 = vmatpush1.msra.mxu0 0.0
          %647 = vmatprep.subr.mxu0 0.0
          %648 = vmatpush1.msra.mxu0 0.0
          %649 = vmatprep.subr.mxu0 0.0
          %650 = vmatpush1.msra.mxu0 0.0
          %651 = vmatprep.subr.mxu0 0.0
          %652 = vmatpush1.msra.mxu0 0.0
          %653 = vmatprep.subr.mxu0 0.0
          %654 = vmatpush1.msra.mxu0 0.0
          %655 = vmatprep.subr.mxu0 0.0
          %656 = vmatpush1.msra.mxu0 0.0
          %657 = vmatprep.subr.mxu0 0.0
          %658 = vmatpush1.msra.mxu0 0.0
          %659 = vmatprep.subr.mxu0 0.0
          %660 = vmatpush1.msra.mxu0 0.0
          %661 = vmatprep.subr.mxu0 0.0
          %662 = vmatpush1.msra.mxu0 0.0
          %663 = vmatprep.subr.mxu0 0.0
          %664 = vmatpush1.msra.mxu0 0.0
          %665 = vmatprep.subr.mxu0 0.0
          %666 = vmatpush1.msra.mxu0 0.0
          %667 = vmatprep.subr.mxu0 0.0
          %668 = vmatpush1.msra.mxu0 0.0
          %669 = vmatprep.subr.mxu0 0.0
          %670 = vmatpush1.msra.mxu0 0.0
          %671 = vmatprep.subr.mxu0 0.0
          %672 = vmatpush1.msra.mxu0 0.0
          %673 = vmatprep.subr.mxu0 0.0
          %674 = vmatpush1.msra.mxu0 0.0
          %675 = vmatprep.subr.mxu0 0.0
          %676 = vmatpush1.msra.mxu0 0.0
          %677 = vmatprep.subr.mxu0 0.0
          %678 = vmatpush1.msra.mxu0 0.0
          %679 = vmatprep.subr.mxu0 0.0
          %680 = vmatpush1.msra.mxu0 0.0
          %681 = vmatprep.subr.mxu0 0.0
          %682 = vmatpush1.msra.mxu0 0.0
          %683 = vmatprep.subr.mxu0 0.0
          %684 = vmatpush1.msra.mxu0 0.0
          %685 = vmatprep.subr.mxu0 0.0
          %686 = vmatpush1.msra.mxu0 0.0
          %687 = vmatprep.subr.mxu0 0.0
          %688 = vmatpush1.msra.mxu0 0.0
          %689 = vmatprep.subr.mxu0 0.0
          %690 = vmatpush1.msra.mxu0 0.0
          %691 = vmatprep.mubr.f32.mxu0 0.0
          %692 = vmatmul.mubr.f32.gmra.mrb[0].mxu0 %v625
          %v693 = vpop.f32.mrb[0].mxu0
          %v694 = vadd.f32 0.0, %v693
          %v695 = vpop.f32.mrb[0].mxu0
          %696 = vdwg.mxu0
          %v697 = vadd.f32 %v623, %v694
          %698 = vst [vmem:[#allocation7] sm:$0xff] %v697
        $region36: #{tpu_custom_call.1} parent=27 // pred_fallthru
          _
        %p699 = scmp.eq.s32.totalorder %s179, 0
        // Predicated region
        $region37: #{tpu_custom_call.1} parent=27 // pred_check
          %p700 = pneg %p699
        $region38: #{tpu_custom_call.1} parent=27 // pred_check_branch
          %702 = sbr.rel (%p700) target = $region40
        $region39: #{tpu_custom_call.1} parent=27 // pred_region
          %v703 = vld [vmem:[#allocation6] sm:$0xff]
          %v704 = vrcp.pop %v703
          %v705 = vld [vmem:[#allocation7] sm:$0xff]
          %707 = vset.pattern.permute.xlu0 0
          %708 = vperm.xlu0 %707, %v704
          %v709 = vpop.permute.xlu0 %708
          %v711 = vmul.f32 %v705, %v709
          %712 = vst [vmem:[%s167] sm:$0xff] %v711
        $region40: #{tpu_custom_call.1} parent=27 // pred_fallthru
          _
        %s713 = sand.u32 %s95, 1
        %s714 = scalar_lea.sflag [#allocation12], %s713
        %s715 = sand.u32 %s95, 1
        %s716 = smul.addr %s715, 8
        %s717 = scalar_lea.vmem [#allocation11], %s716
        // Predicated region
        $region41: #{tpu_custom_call.1} parent=27 // pred_check
          %p718 = pneg %p105
        $region42: #{tpu_custom_call.1} parent=27 // pred_check_branch
          %720 = sbr.rel (%p718) target = $region44
        $region43: #{tpu_custom_call.1} parent=27 // pred_region
          %s721 = sld [smem:[#allocation9 + %s25]]
          %s723 = ssub.s32 128, 128
          %724 = vsyncadd %s714, %s723
          %s725 = sadd.s32 %s721, %s24
          %s726 = smul.addr %s725, 128
          %s727 = scalar_lea.hbm %s4, %s726
          %s729 = sshll.u32 %s717, 4
          %s730 = int_to_ptr.vmem [resolvable:$true] %s729
          %732 = dma.vmem_to_hbm [thread:$0]  %s730, 128, %s727, %s714
        $region44: #{tpu_custom_call.1} parent=27 // pred_fallthru
          _
      $region28: #{tpu_custom_call.1} parent=5 // pred_fallthru
        _
      %p733 = scmp.le.s32.totalorder 2, %s15
      // Predicated region
      $region45: #{tpu_custom_call.1} parent=5 // pred_check
        %p734 = pneg %p733
      $region46: #{tpu_custom_call.1} parent=5 // pred_check_branch
        %736 = sbr.rel (%p734) target = $region48
      $region47: #{tpu_custom_call.1} parent=5 // pred_region
        %s737 = ssub.s32 %s15, 2
        // Predicated region
        $region49: #{tpu_custom_call.1} parent=47 // pred_check
          %p738 = pneg %p111
        $region50: #{tpu_custom_call.1} parent=47 // pred_check_branch
          %740 = sbr.rel (%p738) target = $region52
        $region51: #{tpu_custom_call.1} parent=47 // pred_region
          %s741 = sand.u32 %s96, 1
          %s742 = scalar_lea.sflag [#allocation12], %s741
          %s743 = sand.u32 %s96, 1
          %s744 = smul.addr %s743, 8
          %s745 = scalar_lea.vmem [#allocation11], %s744
          %746 = dma.done %s742, 128
        $region52: #{tpu_custom_call.1} parent=47 // pred_fallthru
          _
      $region48: #{tpu_custom_call.1} parent=5 // pred_fallthru
        _
    $region6: #{tpu_custom_call.1} parent=1 // loop_footer
      %s19 = sadd.s32 1, %s15
    $region7: #{tpu_custom_call.1} parent=1 // loop_footer_branch
      %14 = sbr.rel target = $region3
    $region8: #{tpu_custom_call.1} parent=1 // loop_exit
      _
    %747 = vsyncpa [#allocation12], 1
    %s748 = scalar_lea.sflag [#allocation12], 1
    %749 = vsyncpa %s748, 1

</llo_original>
